<compile_context>
chip_gen: v7x
topology: tpu7x:2x2x1
jax: 0.10.0
libtpu: 0.0.40
codegen_flags: <defaults>
</compile_context>

<pallas_src>
import jax
import jax.numpy as jnp
from jax.experimental import pallas as pl
from jax.experimental.pallas import tpu as pltpu


# ----------------------------------------------------------------------------
# helpers
# ----------------------------------------------------------------------------
def _round_up(n, m):
    return ((n + m - 1) // m) * m


def _chip_info():
    """Best-effort (per-core VMEM bytes, TensorCores per chip); conservative fallbacks."""
    vmem = 64 * 1024 * 1024   # v7x-sized fallback: safe everywhere
    cores = 1
    try:
        info = pltpu.get_tpu_info()
        v = getattr(info, "vmem_capacity_bytes", None)
        if isinstance(v, int) and v > 0:
            vmem = v
        for name in ("num_cores", "num_tensorcores", "tensorcores_per_chip",
                     "cores_per_chip"):
            c = getattr(info, name, None)
            if isinstance(c, int) and c > 0:
                cores = c
                break
    except Exception:
        pass
    return vmem, cores


def _pick_tiles(T, D, H, E_total, out_bytes, vmem_limit, num_cores):
    """Pick (tm, th) so the per-step working set fits ~90% of the VMEM limit,
    preferring the largest token tile (tm sets arithmetic intensity vs streamed
    expert weights) and the largest lane-aligned hidden tile."""
    budget = int(0.9 * vmem_limit)

    # hidden tile: largest 128-multiple divisor of H (<=512); else the whole H.
    th_cands = [c for c in (512, 384, 256, 128) if c <= H and H % c == 0] or [H]

    # token tile candidates: multiples of 16 (bf16 sublane packing).
    t16 = _round_up(max(T, 1), 16)
    tm_cap = min(1024, t16)
    if num_cores >= 2 and t16 >= 32:
        # keep >= 2 token tiles so every TensorCore gets work (v7x megacore)
        tm_cap = min(tm_cap, _round_up((t16 + 1) // 2, 16))
    cands = {min(c, tm_cap) for c in (1024, 512, 256, 128, 64, 32, 16)}
    cands.add(tm_cap)
    tm_cands = sorted(cands, reverse=True)

    def usage(tm, th):
        return (12 * D * th                      # w13 + w2 blocks, double-buffered bf16
                + tm * D * (8 + 2 * out_bytes)   # x (x2 bf16) + acc (f32) + out (x2)
                + 8 * tm * E_total               # combine-weight block (x2, f32)
                + 512 * tm)                      # (tm, 1) f32 scratch, lane-padded

    for tm in tm_cands:
        for th in th_cands:
            if usage(tm, th) <= budget:
                return tm, th
    return tm_cands[-1], th_cands[-1]


# ----------------------------------------------------------------------------
# Router logits kernel: (Tp, D) @ (D, Ep) -> (Tp, Ep), tiled over tokens.
# Ep is num_experts zero-padded to a multiple of 128 so stores are lane-dense.
# ----------------------------------------------------------------------------
def _router_kernel(x_ref, wr_ref, o_ref):
    o_ref[...] = jnp.dot(
        x_ref[...], wr_ref[...], preferred_element_type=jnp.float32
    )


def router_logits(x, w_router_padded, tm, vmem_limit_bytes):
    Tp, D = x.shape
    Ep = w_router_padded.shape[1]
    return pl.pallas_call(
        _router_kernel,
        out_shape=jax.ShapeDtypeStruct((Tp, Ep), jnp.float32),
        grid_spec=pltpu.PrefetchScalarGridSpec(
            num_scalar_prefetch=0,
            grid=(Tp // tm,),
            in_specs=[
                pl.BlockSpec((tm, D), lambda t: (t, 0)),
                pl.BlockSpec((D, Ep), lambda t: (0, 0)),
            ],
            out_specs=pl.BlockSpec((tm, Ep), lambda t: (t, 0)),
        ),
        compiler_params=pltpu.CompilerParams(
            dimension_semantics=("parallel",),
            vmem_limit_bytes=vmem_limit_bytes,
        ),
    )(x, w_router_padded)


# ----------------------------------------------------------------------------
# Expert (+ folded shared) SwiGLU MLP kernel.
#
# grid = (T_tiles, E_total, H_tiles); acc (tm, D) f32 is resident across the
# reduction axes (e, h).  Each step streams one expert's (w1|w3, w2) h-chunk,
# computes the gated contribution with the combine weight folded into the
# gate, and accumulates.
# ----------------------------------------------------------------------------
def _moe_mlp_kernel(x_ref, w13_ref, w2_ref, cw_ref, o_ref, acc_ref, we_ref):
    e = pl.program_id(1)
    h = pl.program_id(2)
    n_e = pl.num_programs(1)
    n_h = pl.num_programs(2)

    @pl.when((e == 0) & (h == 0))
    def _():
        acc_ref[...] = jnp.zeros_like(acc_ref)

    # Combine-weight column for expert e is invariant over the h loop: extract
    # it once per (token tile, expert) into a (tm, 1) scratch and reuse.
    @pl.when(h == 0)
    def _():
        cw = cw_ref[...]                                             # (tm, E_total) f32
        lane = jax.lax.broadcasted_iota(jnp.int32, cw.shape, 1)
        we_ref[...] = jnp.sum(jnp.where(lane == e, cw, 0.0), axis=1, keepdims=True)

    x = x_ref[...]                                                   # (tm, D) bf16
    # w1 and w3 arrive stacked in one DMA stream: w13 block is (1, 2, D, th).
    h1 = jnp.dot(x, w13_ref[0, 0], preferred_element_type=jnp.float32)  # (tm, th) f32
    h3 = jnp.dot(x, w13_ref[0, 1], preferred_element_type=jnp.float32)  # (tm, th) f32
    g = (h1 * jax.nn.sigmoid(h1)) * h3                               # SwiGLU gate (EUP)
    # Fold the combine weight into the (tm, th) gate instead of scaling the
    # (tm, D) output: smaller VPU work, and the acc update stays a pure add.
    g = (g * we_ref[...]).astype(x.dtype)
    acc_ref[...] += jnp.dot(g, w2_ref[0], preferred_element_type=jnp.float32)

    @pl.when((e == n_e - 1) & (h == n_h - 1))
    def _():
        o_ref[...] = acc_ref[...].astype(o_ref.dtype)


def moe_mlp(x, w13, w2, combine_weights, *, out_dtype, tm, th, vmem_limit_bytes):
    """
    x:   (Tp, D) compute dtype (bf16).
    w13: (E_total, 2, D, H) compute dtype (w1 stacked with w3).
    w2:  (E_total, H, D)    compute dtype.
    combine_weights: (Tp, E_total) f32.
    """
    Tp, D = x.shape
    E_total = w13.shape[0]
    H = w13.shape[-1]
    assert Tp % tm == 0 and H % th == 0

    return pl.pallas_call(
        _moe_mlp_kernel,
        out_shape=jax.ShapeDtypeStruct((Tp, D), out_dtype),
        grid_spec=pltpu.PrefetchScalarGridSpec(
            num_scalar_prefetch=0,
            grid=(Tp // tm, E_total, H // th),
            in_specs=[
                pl.BlockSpec((tm, D), lambda t, e, h: (t, 0)),
                pl.BlockSpec((1, 2, D, th), lambda t, e, h: (e, 0, 0, h)),
                pl.BlockSpec((1, th, D), lambda t, e, h: (e, h, 0)),
                pl.BlockSpec((tm, E_total), lambda t, e, h: (t, 0)),
            ],
            out_specs=pl.BlockSpec((tm, D), lambda t, e, h: (t, 0)),
            scratch_shapes=[
                pltpu.VMEM((tm, D), jnp.float32),   # resident f32 accumulator
                pltpu.VMEM((tm, 1), jnp.float32),   # per-expert combine column
            ],
        ),
        compiler_params=pltpu.CompilerParams(
            dimension_semantics=("parallel", "arbitrary", "arbitrary"),
            vmem_limit_bytes=vmem_limit_bytes,
        ),
    )(x, w13, w2, combine_weights)


# ----------------------------------------------------------------------------
# MoE module (forward only), deterministic init.
# ----------------------------------------------------------------------------
class MoE:
    def __init__(self, *, d_model, num_experts, hidden_size, top_k,
                 use_shared_mlp=True, key=None,
                 param_dtype=jnp.float32, compute_dtype=jnp.bfloat16):
        self.d_model = d_model
        self.num_experts = num_experts
        self.hidden_size = hidden_size
        self.top_k = top_k
        self.use_shared_mlp = use_shared_mlp
        self.compute_dtype = compute_dtype

        # Generation-aware VMEM budget + TensorCore count (v5e/v6e: 128 MiB, 1 TC;
        # v7x: 64 MiB, 2 TC).  Conservative fallback if the query is unavailable.
        vmem_cap, num_cores = _chip_info()
        self._vmem_limit = min(vmem_cap, max(48 * 1024 * 1024,
                                             vmem_cap - 12 * 1024 * 1024))
        self._num_cores = num_cores

        key = jax.random.PRNGKey(0) if key is None else key
        ks = jax.random.split(key, 7)
        s = 0.02
        # Router: Linear(d_model -> num_experts), no bias.
        self.w_router = (s * jax.random.normal(ks[0], (d_model, num_experts))).astype(param_dtype)
        # Experts: per-expert SwiGLU MLP weights.
        self.w1 = (s * jax.random.normal(ks[1], (num_experts, d_model, hidden_size))).astype(param_dtype)
        self.w3 = (s * jax.random.normal(ks[2], (num_experts, d_model, hidden_size))).astype(param_dtype)
        self.w2 = (s * jax.random.normal(ks[3], (num_experts, hidden_size, d_model))).astype(param_dtype)
        # Shared SwiGLU MLP (FeedForwardConfig).
        self.sw1 = (s * jax.random.normal(ks[4], (1, d_model, hidden_size))).astype(param_dtype)
        self.sw3 = (s * jax.random.normal(ks[5], (1, d_model, hidden_size))).astype(param_dtype)
        self.sw2 = (s * jax.random.normal(ks[6], (1, hidden_size, d_model))).astype(param_dtype)

        # --- precomputed compute-dtype (bf16) copies laid out for the kernels ---
        Ep = _round_up(num_experts, 128)
        self.w_router_p = (
            jnp.zeros((d_model, Ep), compute_dtype)
            .at[:, :num_experts]
            .set(self.w_router.astype(compute_dtype))
        )
        if use_shared_mlp:
            # Fold shared MLP in as expert index E (one kernel call total).
            w1_all = jnp.concatenate([self.w1, self.sw1], axis=0)
            w3_all = jnp.concatenate([self.w3, self.sw3], axis=0)
            w2_all = jnp.concatenate([self.w2, self.sw2], axis=0)
        else:
            w1_all, w3_all, w2_all = self.w1, self.w3, self.w2
        # Stack w1/w3 into a single tensor so the kernel streams one weight DMA
        # stream for the gate/up projections: (E_total, 2, D, H).
        self.w13_all = jnp.stack(
            [w1_all.astype(compute_dtype), w3_all.astype(compute_dtype)], axis=1
        )
        self.w2_all = w2_all.astype(compute_dtype)

    def __call__(self, x):
        """x: (*, d_model) -> (*, d_model)."""
        orig_shape = x.shape
        D, E, K = self.d_model, self.num_experts, self.top_k
        xf = x.reshape(-1, D)
        T = xf.shape[0]
        E_total = self.w2_all.shape[0]

        tm, th = _pick_tiles(
            T, D, self.hidden_size, E_total,
            out_bytes=jnp.dtype(x.dtype).itemsize,
            vmem_limit=self._vmem_limit,
            num_cores=self._num_cores,
        )
        Tp = _round_up(T, tm)
        xp = jnp.pad(xf, ((0, Tp - T), (0, 0))) if Tp != T else xf
        xc = xp.astype(self.compute_dtype)

        # --- Router (Pallas matmul, f32 accumulate; softmax / top-k are glue) ---
        logits = router_logits(xc, self.w_router_p, tm, self._vmem_limit)[:, :E]
        scores = jax.nn.softmax(logits, axis=-1)                      # (Tp, E) f32
        expert_weights, expert_indices = jax.lax.top_k(scores, K)     # (Tp, K)
        # Dense combine matrix via scatter-add (no (Tp, K, E) one-hot blow-up):
        # combine[t, e] = sum_k weights[t, k] * [indices[t, k] == e]
        combine = jnp.zeros((Tp, E), jnp.float32).at[
            jnp.arange(Tp)[:, None], expert_indices
        ].add(expert_weights.astype(jnp.float32))
        if Tp != T:
            # padded token rows contribute nothing (cheap skip of pad compute)
            combine = jnp.where(jnp.arange(Tp)[:, None] < T, combine, 0.0)

        # --- Experts (+ folded shared MLP) in one Pallas call ---
        if self.use_shared_mlp:
            scale = K / (K + 1.0)
            shared_col = jnp.full((Tp, 1), 1.0 / (K + 1.0), dtype=jnp.float32)
            if Tp != T:
                shared_col = jnp.where(jnp.arange(Tp)[:, None] < T, shared_col, 0.0)
            cw = jnp.concatenate([combine * scale, shared_col], axis=1)  # (Tp, E+1)
        else:
            cw = combine

        out = moe_mlp(xc, self.w13_all, self.w2_all, cw,
                      out_dtype=x.dtype, tm=tm, th=th,
                      vmem_limit_bytes=self._vmem_limit)               # (Tp, D)

        return out[:T].reshape(orig_shape)


if __name__ == "__main__":
    batch, seq, d_model, hidden_size = 2, 8, 32, 64
    num_experts, top_k = 4, 2

    key = jax.random.PRNGKey(0)
    kx, kp = jax.random.split(key)
    x = jax.random.normal(kx, (batch, seq, d_model), dtype=jnp.float32)

    moe = MoE(d_model=d_model, num_experts=num_experts,
              hidden_size=hidden_size, top_k=top_k,
              use_shared_mlp=True, key=kp)

    out = jax.jit(moe.__call__)(x)
    jax.block_until_ready(out)
    assert out.shape == x.shape and out.dtype == x.dtype
    assert bool(jnp.all(jnp.isfinite(out)))
    print("KERNEL_OK")
</pallas_src>

<mosaic_0001>
module attributes {stable_mosaic.version = 11 : i64} {
  func.func private @main(%arg0: i32) attributes {dimension_semantics = [#tpu.dimension_semantics<core_parallel>], iteration_bounds = array<i64: 2>, tpu.core_type = #tpu.core_type<sc_scalar_subcore>, window_params = []} {
    return
  }
}

module attributes {stable_mosaic.version = 11 : i64} {
  func.func private @main(%arg0: i32) attributes {dimension_semantics = [#tpu.dimension_semantics<core_parallel>], iteration_bounds = array<i64: 2>, tpu.core_type = #tpu.core_type<sc_scalar_subcore>, window_params = []} {
    return
  }
}

module attributes {stable_mosaic.version = 11 : i64} {
  func.func @_router_kernel(%arg0: i32, %arg1: memref<16x32xbf16, #tpu.memory_space<vmem>>, %arg2: memref<32x128xbf16, #tpu.memory_space<vmem>>, %arg3: memref<16x128xf32, #tpu.memory_space<vmem>>) attributes {dimension_semantics = [#tpu.dimension_semantics<parallel>], iteration_bounds = array<i64: 1>, scalar_prefetch = 0 : i64, scratch_operands = 0 : i64, tpu.core_type = #tpu.core_type<tc>, window_params = [{transform_indices = @transform_0, window_bounds = array<i64: 16, 32>}, {pipeline_mode = #tpu.pipeline_mode<synchronous>, transform_indices = @transform_1, window_bounds = array<i64: 32, 128>}, {transform_indices = @transform_2, window_bounds = array<i64: 16, 128>}]} {
    %c0 = arith.constant 0 : index
    %c0_0 = arith.constant 0 : index
    %0 = vector.load %arg1[%c0, %c0_0] : memref<16x32xbf16, #tpu.memory_space<vmem>>, vector<16x32xbf16>
    %c0_1 = arith.constant 0 : index
    %c0_2 = arith.constant 0 : index
    %1 = vector.load %arg2[%c0_1, %c0_2] : memref<32x128xbf16, #tpu.memory_space<vmem>>, vector<32x128xbf16>
    %cst = arith.constant dense<0.000000e+00> : vector<16x128xf32>
    %2 = tpu.matmul %0, %1, %cst {dimension_numbers = #tpu.dot_dimension_numbers<[1], [0], [0], [1], [0, 0, 1, 1], [], []>} : vector<16x32xbf16>, vector<32x128xbf16>, vector<16x128xf32> -> vector<16x128xf32>
    %c0_3 = arith.constant 0 : index
    %c0_4 = arith.constant 0 : index
    %3 = vector.load %arg3[%c0_3, %c0_4] : memref<16x128xf32, #tpu.memory_space<vmem>>, vector<16x128xf32>
    tpu.vector_store %arg3[%c0_3, %c0_4], %2 {strides = array<i32>} : memref<16x128xf32, #tpu.memory_space<vmem>>, vector<16x128xf32>,
    return
  }
  func.func @transform_0(%arg0: i32) -> (i32, i32) {
    %c0_i32 = arith.constant 0 : i32
    %c0_i32_0 = arith.constant 0 : i32
    return %arg0, %c0_i32 : i32, i32
  }
  func.func @transform_1(%arg0: i32) -> (i32, i32) {
    %c0_i32 = arith.constant 0 : i32
    %c0_i32_0 = arith.constant 0 : i32
    %c0_i32_1 = arith.constant 0 : i32
    return %c0_i32, %c0_i32_0 : i32, i32
  }
  func.func @transform_2(%arg0: i32) -> (i32, i32) {
    %c0_i32 = arith.constant 0 : i32
    %c0_i32_0 = arith.constant 0 : i32
    return %arg0, %c0_i32 : i32, i32
  }
}

module attributes {stable_mosaic.version = 11 : i64} {
  func.func @_moe_mlp_kernel(%arg0: i32, %arg1: i32, %arg2: i32, %arg3: memref<16x32xbf16, #tpu.memory_space<vmem>>, %arg4: memref<1x2x32x64xbf16, #tpu.memory_space<vmem>>, %arg5: memref<1x64x32xbf16, #tpu.memory_space<vmem>>, %arg6: memref<16x5xf32, #tpu.memory_space<vmem>>, %arg7: memref<16x32xf32, #tpu.memory_space<vmem>>, %arg8: memref<16x32xf32, #tpu.memory_space<vmem>>, %arg9: memref<16x1xf32, #tpu.memory_space<vmem>>) attributes {dimension_semantics = [#tpu.dimension_semantics<parallel>, #tpu.dimension_semantics<arbitrary>, #tpu.dimension_semantics<arbitrary>], iteration_bounds = array<i64: 1, 5, 1>, scalar_prefetch = 0 : i64, scratch_operands = 2 : i64, tpu.core_type = #tpu.core_type<tc>, window_params = [{transform_indices = @transform_0, window_bounds = array<i64: 16, 32>}, {transform_indices = @transform_1, window_bounds = array<i64: 1, 2, 32, 64>}, {transform_indices = @transform_2, window_bounds = array<i64: 1, 64, 32>}, {transform_indices = @transform_3, window_bounds = array<i64: 16, 5>}, {transform_indices = @transform_4, window_bounds = array<i64: 16, 32>}]} {
    %c0_i32 = arith.constant 0 : i32
    %0 = arith.cmpi eq, %arg1, %c0_i32 : i32
    %c0_i32_0 = arith.constant 0 : i32
    %1 = arith.cmpi eq, %arg2, %c0_i32_0 : i32
    %2 = arith.andi %0, %1 : i1
    %3 = arith.extui %2 : i1 to i32
    %c0_i32_1 = arith.constant 0 : i32
    %4 = arith.cmpi ne, %3, %c0_i32_1 : i32
    scf.if %4 {
      %cst_26 = arith.constant 0.000000e+00 : f32
      %37 = vector.broadcast %cst_26 : f32 to vector<16x32xf32>
      %c0_27 = arith.constant 0 : index
      %c0_28 = arith.constant 0 : index
      %38 = vector.load %arg8[%c0_27, %c0_28] : memref<16x32xf32, #tpu.memory_space<vmem>>, vector<16x32xf32>
      tpu.vector_store %arg8[%c0_27, %c0_28], %37 {strides = array<i32>} : memref<16x32xf32, #tpu.memory_space<vmem>>, vector<16x32xf32>,
    } else {
    }
    %c0_i32_2 = arith.constant 0 : i32
    %5 = arith.cmpi eq, %arg2, %c0_i32_2 : i32
    %6 = arith.extui %5 : i1 to i32
    %c0_i32_3 = arith.constant 0 : i32
    %7 = arith.cmpi ne, %6, %c0_i32_3 : i32
    scf.if %7 {
      %c0_26 = arith.constant 0 : index
      %c0_27 = arith.constant 0 : index
      %37 = vector.load %arg6[%c0_26, %c0_27] : memref<16x5xf32, #tpu.memory_space<vmem>>, vector<16x5xf32>
      %38 = tpu.iota {dimensions = array<i32: 1>} : vector<16x5xi32>
      %39 = vector.broadcast %arg1 : i32 to vector<16x5xi32>
      %40 = arith.cmpi eq, %38, %39 : vector<16x5xi32>
      %cst_28 = arith.constant 0.000000e+00 : f32
      %41 = vector.broadcast %cst_28 : f32 to vector<16x5xf32>
      %42 = arith.select %40, %37, %41 : vector<16x5xi1>, vector<16x5xf32>
      %cst_29 = arith.constant dense<0.000000e+00> : vector<16xf32>
      %43 = vector.multi_reduction <add>, %42, %cst_29 [1] : vector<16x5xf32> to vector<16xf32>
      %44 = vector.shape_cast %43 : vector<16xf32> to vector<16x1xf32>
      %c0_30 = arith.constant 0 : index
      %c0_31 = arith.constant 0 : index
      %45 = vector.load %arg9[%c0_30, %c0_31] : memref<16x1xf32, #tpu.memory_space<vmem>>, vector<16x1xf32>
      tpu.vector_store %arg9[%c0_30, %c0_31], %44 {strides = array<i32>} : memref<16x1xf32, #tpu.memory_space<vmem>>, vector<16x1xf32>,
    } else {
    }
    %c0 = arith.constant 0 : index
    %c0_4 = arith.constant 0 : index
    %8 = vector.load %arg3[%c0, %c0_4] : memref<16x32xbf16, #tpu.memory_space<vmem>>, vector<16x32xbf16>
    %c0_5 = arith.constant 0 : index
    %c0_6 = arith.constant 0 : index
    %c0_7 = arith.constant 0 : index
    %c0_8 = arith.constant 0 : index
    %9 = vector.load %arg4[%c0_5, %c0_6, %c0_7, %c0_8] : memref<1x2x32x64xbf16, #tpu.memory_space<vmem>>, vector<1x1x32x64xbf16>
    %10 = vector.shape_cast %9 : vector<1x1x32x64xbf16> to vector<32x64xbf16>
    %cst = arith.constant dense<0.000000e+00> : vector<16x64xf32>
    %11 = tpu.matmul %8, %10, %cst {dimension_numbers = #tpu.dot_dimension_numbers<[1], [0], [0], [1], [0, 0, 1, 1], [], []>} : vector<16x32xbf16>, vector<32x64xbf16>, vector<16x64xf32> -> vector<16x64xf32>
    %c0_9 = arith.constant 0 : index
    %c1 = arith.constant 1 : index
    %c0_10 = arith.constant 0 : index
    %c0_11 = arith.constant 0 : index
    %12 = vector.load %arg4[%c0_9, %c1, %c0_10, %c0_11] : memref<1x2x32x64xbf16, #tpu.memory_space<vmem>>, vector<1x1x32x64xbf16>
    %13 = vector.shape_cast %12 : vector<1x1x32x64xbf16> to vector<32x64xbf16>
    %cst_12 = arith.constant dense<0.000000e+00> : vector<16x64xf32>
    %14 = tpu.matmul %8, %13, %cst_12 {dimension_numbers = #tpu.dot_dimension_numbers<[1], [0], [0], [1], [0, 0, 1, 1], [], []>} : vector<16x32xbf16>, vector<32x64xbf16>, vector<16x64xf32> -> vector<16x64xf32>
    %15 = arith.negf %11 : vector<16x64xf32>
    %16 = math.exp %15 : vector<16x64xf32>
    %cst_13 = arith.constant 1.000000e+00 : f32
    %17 = vector.broadcast %cst_13 : f32 to vector<16x64xf32>
    %18 = arith.addf %17, %16 : vector<16x64xf32>
    %19 = arith.divf %17, %18 : vector<16x64xf32>
    %20 = arith.mulf %11, %19 : vector<16x64xf32>
    %21 = arith.mulf %20, %14 : vector<16x64xf32>
    %c0_14 = arith.constant 0 : index
    %c0_15 = arith.constant 0 : index
    %22 = vector.load %arg9[%c0_14, %c0_15] : memref<16x1xf32, #tpu.memory_space<vmem>>, vector<16x1xf32>
    %23 = vector.broadcast %22 : vector<16x1xf32> to vector<16x64xf32>
    %24 = arith.mulf %21, %23 : vector<16x64xf32>
    %25 = arith.truncf %24 : vector<16x64xf32> to vector<16x64xbf16>
    %c0_16 = arith.constant 0 : index
    %c0_17 = arith.constant 0 : index
    %26 = vector.load %arg8[%c0_16, %c0_17] : memref<16x32xf32, #tpu.memory_space<vmem>>, vector<16x32xf32>
    %c0_18 = arith.constant 0 : index
    %c0_19 = arith.constant 0 : index
    %c0_20 = arith.constant 0 : index
    %27 = vector.load %arg5[%c0_18, %c0_19, %c0_20] : memref<1x64x32xbf16, #tpu.memory_space<vmem>>, vector<1x64x32xbf16>
    %28 = vector.shape_cast %27 : vector<1x64x32xbf16> to vector<64x32xbf16>
    %cst_21 = arith.constant dense<0.000000e+00> : vector<16x32xf32>
    %29 = tpu.matmul %25, %28, %cst_21 {dimension_numbers = #tpu.dot_dimension_numbers<[1], [0], [0], [1], [0, 0, 1, 1], [], []>} : vector<16x64xbf16>, vector<64x32xbf16>, vector<16x32xf32> -> vector<16x32xf32>
    %30 = arith.addf %26, %29 : vector<16x32xf32>
    %c0_22 = arith.constant 0 : index
    %c0_23 = arith.constant 0 : index
    %31 = vector.load %arg8[%c0_22, %c0_23] : memref<16x32xf32, #tpu.memory_space<vmem>>, vector<16x32xf32>
    tpu.vector_store %arg8[%c0_22, %c0_23], %30 {strides = array<i32>} : memref<16x32xf32, #tpu.memory_space<vmem>>, vector<16x32xf32>,
    %c4_i32 = arith.constant 4 : i32
    %32 = arith.cmpi eq, %arg1, %c4_i32 : i32
    %c0_i32_24 = arith.constant 0 : i32
    %33 = arith.cmpi eq, %arg2, %c0_i32_24 : i32
    %34 = arith.andi %32, %33 : i1
    %35 = arith.extui %34 : i1 to i32
    %c0_i32_25 = arith.constant 0 : i32
    %36 = arith.cmpi ne, %35, %c0_i32_25 : i32
    scf.if %36 {
      %c0_26 = arith.constant 0 : index
      %c0_27 = arith.constant 0 : index
      %37 = vector.load %arg8[%c0_26, %c0_27] : memref<16x32xf32, #tpu.memory_space<vmem>>, vector<16x32xf32>
      %c0_28 = arith.constant 0 : index
      %c0_29 = arith.constant 0 : index
      %38 = vector.load %arg7[%c0_28, %c0_29] : memref<16x32xf32, #tpu.memory_space<vmem>>, vector<16x32xf32>
      tpu.vector_store %arg7[%c0_28, %c0_29], %37 {strides = array<i32>} : memref<16x32xf32, #tpu.memory_space<vmem>>, vector<16x32xf32>,
    } else {
    }
    return
  }
  func.func @transform_0(%arg0: i32, %arg1: i32, %arg2: i32) -> (i32, i32) {
    %c0_i32 = arith.constant 0 : i32
    %c0_i32_0 = arith.constant 0 : i32
    return %arg0, %c0_i32 : i32, i32
  }
  func.func @transform_1(%arg0: i32, %arg1: i32, %arg2: i32) -> (i32, i32, i32, i32) {
    %c0_i32 = arith.constant 0 : i32
    %c0_i32_0 = arith.constant 0 : i32
    %c0_i32_1 = arith.constant 0 : i32
    return %arg1, %c0_i32, %c0_i32_0, %arg2 : i32, i32, i32, i32
  }
  func.func @transform_2(%arg0: i32, %arg1: i32, %arg2: i32) -> (i32, i32, i32) {
    %c0_i32 = arith.constant 0 : i32
    %c0_i32_0 = arith.constant 0 : i32
    return %arg1, %arg2, %c0_i32 : i32, i32, i32
  }
  func.func @transform_3(%arg0: i32, %arg1: i32, %arg2: i32) -> (i32, i32) {
    %c0_i32 = arith.constant 0 : i32
    %c0_i32_0 = arith.constant 0 : i32
    return %arg0, %c0_i32 : i32, i32
  }
  func.func @transform_4(%arg0: i32, %arg1: i32, %arg2: i32) -> (i32, i32) {
    %c0_i32 = arith.constant 0 : i32
    %c0_i32_0 = arith.constant 0 : i32
    return %arg0, %c0_i32 : i32, i32
  }
}

</mosaic_0001>

<llo_original>
// kernel: a_call__.2
$region0: #{a_call__.2}
  #allocation0 [shape = 'u32[]', space=smem, size = 0x4, offset = 0x4, fixed_abs, tag = 'smem constant byte address 0x4 - core index']
  #allocation1 [shape = 'u32[144,128]{1,0:T(1,128)}', space=vmem, size = 0x12000, scoped, tag = 'internal scratch']
  %s0 = inlined_call_operand.vmem [shape: bf16[16,32], index: 0, kind: input, shape index: {}]
  %s1 = inlined_call_operand.vmem [shape: bf16[32,128], index: 1, kind: input, shape index: {}]
  %s2 = inlined_call_operand.vmem [shape: f32[16,128], index: 2, kind: output, shape index: {}]
  %s3 = sld [smem:[#allocation0]]
  $region18: #{a_call__.2} parent=0
    _
  %s5 = ssub.s32 1, %s3
  %s6 = scalar_select 0, %s5, %s3
  // Predicated region
  $region2: #{a_call__.2} parent=0 // pred_check
    _
  $region3: #{a_call__.2} parent=0 // pred_check_branch
    %8 = sbr.rel (0) target = $region5
  $region4: #{a_call__.2} parent=0 // pred_region
    _
  $region5: #{a_call__.2} parent=0 // pred_fallthru
    _
  // Predicated region
  $region6: #{a_call__.2} parent=0 // pred_check
    _
  $region7: #{a_call__.2} parent=0 // pred_check_branch
    %10 = sbr.rel (0) target = $region9
  $region8: #{a_call__.2} parent=0 // pred_region
    _
  $region9: #{a_call__.2} parent=0 // pred_fallthru
    _
  %v12 = vld [vmem:[%s0] sm:$0xf]
  %v13 = vld [vmem:[%s0 + $0x4] sm:$0xf]
  %v14 = vld [vmem:[%s1] sm:$0xf]
  %v15 = vld [vmem:[%s1 + $0x4] sm:$0xf]
  %v16 = vld [vmem:[%s1 + $0x8] sm:$0xf]
  %v17 = vld [vmem:[%s1 + $0xc] sm:$0xf]
  %v20 = vunpack.c.l.b16 %v12
  %v21 = vunpack.c.l.b16 %v13
  %v22 = vpack.c.b16 %v21, %v20
  %v27 = vunpack.c.l.b16 %v14
  %v28 = vunpack.c.l.b16 %v15
  %v29 = vunpack.c.l.b16 %v16
  %v30 = vunpack.c.l.b16 %v17
  %v31 = vpack.c.b16 %v28, %v27
  %v32 = vpack.c.b16 %v30, %v29
  %vm35 = vcmask 261120
  %v37 = vsel %vm35, %v22, 0
  %39 = vmatprep.subr.bf16.mxu0 0
  %40 = vmatpush1.bf16.msra.mxu0 %v31
  %41 = vmatprep.subr.bf16.mxu0 0
  %42 = vmatpush1.bf16.msra.mxu0 %v32
  %43 = vmatprep.subr.bf16.mxu0 0
  %44 = vmatpush1.bf16.msra.mxu0 0
  %45 = vmatprep.subr.bf16.mxu0 0
  %46 = vmatpush1.bf16.msra.mxu0 0
  %47 = vmatprep.subr.bf16.mxu0 0
  %48 = vmatpush1.bf16.msra.mxu0 0
  %49 = vmatprep.subr.bf16.mxu0 0
  %50 = vmatpush1.bf16.msra.mxu0 0
  %51 = vmatprep.subr.bf16.mxu0 0
  %52 = vmatpush1.bf16.msra.mxu0 0
  %53 = vmatprep.subr.bf16.mxu0 0
  %54 = vmatpush1.bf16.msra.mxu0 0
  %55 = vmatprep.subr.bf16.mxu0 0
  %56 = vmatpush1.bf16.msra.mxu0 0
  %57 = vmatprep.subr.bf16.mxu0 0
  %58 = vmatpush1.bf16.msra.mxu0 0
  %59 = vmatprep.subr.bf16.mxu0 0
  %60 = vmatpush1.bf16.msra.mxu0 0
  %61 = vmatprep.subr.bf16.mxu0 0
  %62 = vmatpush1.bf16.msra.mxu0 0
  %63 = vmatprep.subr.bf16.mxu0 0
  %64 = vmatpush1.bf16.msra.mxu0 0
  %65 = vmatprep.subr.bf16.mxu0 0
  %66 = vmatpush1.bf16.msra.mxu0 0
  %67 = vmatprep.subr.bf16.mxu0 0
  %68 = vmatpush1.bf16.msra.mxu0 0
  %69 = vmatprep.subr.bf16.mxu0 0
  %70 = vmatpush1.bf16.msra.mxu0 0
  %71 = vmatprep.mubr.bf16.mxu0 0
  %72 = vmatmul.mubr.bf16.gmra.mrb[0].mxu0 %v37
  %v73 = vpop.f32.mrb[0].mxu0
  %v74 = vadd.f32 0.0, %v73
  %v75 = vpop.f32.mrb[0].mxu0
  %v76 = vpop.f32.mrb[0].mxu0
  %v77 = vadd.f32 0.0, %v76
  %v78 = vpop.f32.mrb[0].mxu0
  %79 = vdwg.mxu0
  %80 = vst [vmem:[%s2] sm:$0xff] %v74
  %81 = vst [vmem:[%s2 + $0x8] sm:$0xff] %v77
  // Predicated region
  $region10: #{a_call__.2} parent=0 // pred_check
    _
  $region11: #{a_call__.2} parent=0 // pred_check_branch
    %83 = sbr.rel (0) target = $region13
  $region12: #{a_call__.2} parent=0 // pred_region
    _
  $region13: #{a_call__.2} parent=0 // pred_fallthru
    _
  // Predicated region
  $region14: #{a_call__.2} parent=0 // pred_check
    _
  $region15: #{a_call__.2} parent=0 // pred_check_branch
    %85 = sbr.rel (0) target = $region17
  $region16: #{a_call__.2} parent=0 // pred_region
    _
  $region17: #{a_call__.2} parent=0 // pred_fallthru
    _

// kernel: a_call__.3
$region0: #{a_call__.3}
  #allocation0 [shape = 'u32[]', space=smem, size = 0x4, offset = 0x4, fixed_abs, tag = 'smem constant byte address 0x4 - core index']
  #allocation1 [shape = 'u32[144,128]{1,0:T(1,128)}', space=vmem, size = 0x12000, scoped, tag = 'internal scratch']
  #allocation2 [shape = 'f32[16,32]{1,0:T(8,128)}', space=vmem, size = 0x2000, scoped, tag = 'scratch operand']
  #allocation3 [shape = 'f32[16,1]{1,0:T(8,128)}', space=vmem, size = 0x2000, scoped, tag = 'scratch operand']
  %s0 = inlined_call_operand.vmem [shape: bf16[16,32], index: 0, kind: input, shape index: {}]
  %s1 = inlined_call_operand.vmem [shape: bf16[5,2,32,64], index: 1, kind: input, shape index: {}]
  %s2 = inlined_call_operand.vmem [shape: bf16[5,64,32], index: 2, kind: input, shape index: {}]
  %s3 = inlined_call_operand.vmem [shape: f32[16,5], index: 3, kind: input, shape index: {}]
  %s4 = inlined_call_operand.hbm [shape: f32[16,32], index: 4, kind: output, shape index: {}]
  %s5 = sld [smem:[#allocation0]]
  $region61: #{a_call__.3} parent=0
    _
  %s7 = ssub.s32 1, %s5
  %s8 = scalar_select 0, %s7, %s5
  $region1: #{a_call__.3} parent=0
    #allocation4 [shape = 'u8[8192]{0}', space=vmem, size = 0x2000, scoped, tag = 'output window, operand 0, single buffered']
    #allocation5 [shape = 's32[2]{0}', space=sflag, size = 0x8, scoped, tag = 'scoped memory for a_call__.3']
    %9 = vsyncpa [#allocation5], 0
    loop: start=0, step=1, limit=7
    $region2: #{a_call__.3} parent=1 // loop_pre_header
      _
    $region3: #{a_call__.3} parent=1 // loop_header
      %s11 = sphi 0, %s15
      %p12 = scmp.ge.s32.totalorder %s11, 7
      %s18 = sphi 0, %s37
      %s19 = sphi 0, %s33
      %s20 = sphi 0, %s29
      %s21 = sphi 0, %s18
      %s22 = sphi 0, %s19
      %s23 = sphi 0, %s20
      %s24 = sphi 0, %s21
      %s25 = sphi 0, %s22
      %s26 = sphi 0, %s23
      %s40 = sphi 0, %s42
      %s43 = sphi 0, %s40
      %s44 = sphi 0, %s43
      %s60 = sphi 0, %s44
      %s68 = sphi 0, %s70
      %s71 = sphi 0, %s68
      %s72 = sphi 0, %s71
      %s88 = sphi 0, %s72
      %s96 = sphi 0, %s98
      %s99 = sphi 0, %s96
      %s100 = sphi 0, %s99
      %s116 = sphi 0, %s100
      %s122 = sphi 0, %s124
      %s125 = sphi 0, %s122
      %s126 = sphi 0, %s125
      %s142 = sphi 0, %s126
      %s148 = sphi 0, %s150
      %s151 = sphi 0, %s148
      %s152 = sphi 0, %s151
      %s168 = sphi 0, %s152
    $region4: #{a_call__.3} parent=1 // loop_header_branch
      %14 = sbr.rel (%p12) target = $region8
    $region5: #{a_call__.3} parent=1 // loop_body
      %s16 = ssub.s32 %s11, 1
      %s17 = ssub.s32 %s11, 2
      %s27 = sadd.s32 1, %s20
      %p28 = scmp.ge.s32.totalorder %s27, 1
      %s29 = scalar_select %p28, 0, %s27
      %s30 = sadd.s32 1, %s19
      %s31 = scalar_select %p28, %s30, %s19
      %p32 = scmp.ge.s32.totalorder %s31, 5
      %s33 = scalar_select %p32, 0, %s31
      %s34 = sadd.s32 1, %s18
      %s35 = scalar_select %p32, %s34, %s18
      %p36 = scmp.ge.s32.totalorder %s35, 1
      %s37 = scalar_select %p36, 0, %s35
      %s38 = ssub.s32 %s18, %s37
      %p39 = scmp.eq.s32.totalorder %s38, 0
      %s41 = sadd.s32 %s40, 1
      %s42 = scalar_select %p39, %s40, %s41
      %p45 = pneg %p39
      %p46 = scmp.eq.s32.totalorder %s11, 4
      %p47 = por %p45, %p46
      %p48 = scmp.ne.s32.totalorder %s40, %s43
      %p49 = scmp.eq.s32.totalorder %s11, 0
      %p50 = por %p48, %p49
      %p51 = scmp.ne.s32.totalorder %s40, %s43
      %p52 = scmp.eq.s32.totalorder %s16, 4
      %p53 = por %p51, %p52
      %p54 = scmp.ne.s32.totalorder %s43, %s44
      %p55 = scmp.eq.s32.totalorder %s16, 0
      %p56 = por %p54, %p55
      %p57 = scmp.ne.s32.totalorder %s43, %s44
      %p58 = scmp.eq.s32.totalorder %s17, 4
      %p59 = por %p57, %p58
      %p61 = scmp.ne.s32.totalorder %s44, %s60
      %p62 = scmp.eq.s32.totalorder %s17, 0
      %p63 = por %p61, %p62
      %s64 = ssub.s32 %s19, %s33
      %s65 = ssub.s32 %s20, %s29
      %s66 = sor.u32 %s64, %s65
      %p67 = scmp.eq.s32.totalorder %s66, 0
      %s69 = sadd.s32 %s68, 1
      %s70 = scalar_select %p67, %s68, %s69
      %p73 = pneg %p67
      %p74 = scmp.eq.s32.totalorder %s11, 4
      %p75 = por %p73, %p74
      %p76 = scmp.ne.s32.totalorder %s68, %s71
      %p77 = scmp.eq.s32.totalorder %s11, 0
      %p78 = por %p76, %p77
      %p79 = scmp.ne.s32.totalorder %s68, %s71
      %p80 = scmp.eq.s32.totalorder %s16, 4
      %p81 = por %p79, %p80
      %p82 = scmp.ne.s32.totalorder %s71, %s72
      %p83 = scmp.eq.s32.totalorder %s16, 0
      %p84 = por %p82, %p83
      %p85 = scmp.ne.s32.totalorder %s71, %s72
      %p86 = scmp.eq.s32.totalorder %s17, 4
      %p87 = por %p85, %p86
      %p89 = scmp.ne.s32.totalorder %s72, %s88
      %p90 = scmp.eq.s32.totalorder %s17, 0
      %p91 = por %p89, %p90
      %s92 = ssub.s32 %s19, %s33
      %s93 = ssub.s32 %s20, %s29
      %s94 = sor.u32 %s92, %s93
      %p95 = scmp.eq.s32.totalorder %s94, 0
      %s97 = sadd.s32 %s96, 1
      %s98 = scalar_select %p95, %s96, %s97
      %p101 = pneg %p95
      %p102 = scmp.eq.s32.totalorder %s11, 4
      %p103 = por %p101, %p102
      %p104 = scmp.ne.s32.totalorder %s96, %s99
      %p105 = scmp.eq.s32.totalorder %s11, 0
      %p106 = por %p104, %p105
      %p107 = scmp.ne.s32.totalorder %s96, %s99
      %p108 = scmp.eq.s32.totalorder %s16, 4
      %p109 = por %p107, %p108
      %p110 = scmp.ne.s32.totalorder %s99, %s100
      %p111 = scmp.eq.s32.totalorder %s16, 0
      %p112 = por %p110, %p111
      %p113 = scmp.ne.s32.totalorder %s99, %s100
      %p114 = scmp.eq.s32.totalorder %s17, 4
      %p115 = por %p113, %p114
      %p117 = scmp.ne.s32.totalorder %s100, %s116
      %p118 = scmp.eq.s32.totalorder %s17, 0
      %p119 = por %p117, %p118
      %s120 = ssub.s32 %s18, %s37
      %p121 = scmp.eq.s32.totalorder %s120, 0
      %s123 = sadd.s32 %s122, 1
      %s124 = scalar_select %p121, %s122, %s123
      %p127 = pneg %p121
      %p128 = scmp.eq.s32.totalorder %s11, 4
      %p129 = por %p127, %p128
      %p130 = scmp.ne.s32.totalorder %s122, %s125
      %p131 = scmp.eq.s32.totalorder %s11, 0
      %p132 = por %p130, %p131
      %p133 = scmp.ne.s32.totalorder %s122, %s125
      %p134 = scmp.eq.s32.totalorder %s16, 4
      %p135 = por %p133, %p134
      %p136 = scmp.ne.s32.totalorder %s125, %s126
      %p137 = scmp.eq.s32.totalorder %s16, 0
      %p138 = por %p136, %p137
      %p139 = scmp.ne.s32.totalorder %s125, %s126
      %p140 = scmp.eq.s32.totalorder %s17, 4
      %p141 = por %p139, %p140
      %p143 = scmp.ne.s32.totalorder %s126, %s142
      %p144 = scmp.eq.s32.totalorder %s17, 0
      %p145 = por %p143, %p144
      %s146 = ssub.s32 %s18, %s37
      %p147 = scmp.eq.s32.totalorder %s146, 0
      %s149 = sadd.s32 %s148, 1
      %s150 = scalar_select %p147, %s148, %s149
      %p153 = pneg %p147
      %p154 = scmp.eq.s32.totalorder %s11, 4
      %p155 = por %p153, %p154
      %p156 = scmp.ne.s32.totalorder %s148, %s151
      %p157 = scmp.eq.s32.totalorder %s11, 0
      %p158 = por %p156, %p157
      %p159 = scmp.ne.s32.totalorder %s148, %s151
      %p160 = scmp.eq.s32.totalorder %s16, 4
      %p161 = por %p159, %p160
      %p162 = scmp.ne.s32.totalorder %s151, %s152
      %p163 = scmp.eq.s32.totalorder %s16, 0
      %p164 = por %p162, %p163
      %p165 = scmp.ne.s32.totalorder %s151, %s152
      %p166 = scmp.eq.s32.totalorder %s17, 4
      %p167 = por %p165, %p166
      %p169 = scmp.ne.s32.totalorder %s152, %s168
      %p170 = scmp.eq.s32.totalorder %s17, 0
      %p171 = por %p169, %p170
      %p172 = scmp.le.s32.totalorder 1, %s11
      %p173 = scmp.lt.s32.totalorder %s11, 6
      %p174 = pnand %p172, %p173
      %p175 = pneg %p174
      // Predicated region
      $region9: #{a_call__.3} parent=5 // pred_check
        _
      $region10: #{a_call__.3} parent=5 // pred_check_branch
        %177 = sbr.rel (%p174) target = $region12
      $region11: #{a_call__.3} parent=5 // pred_region
        %s178 = ssub.s32 %s11, 1
        // Predicated region
        $region13: #{a_call__.3} parent=11 // pred_check
          %p179 = pneg %p56
        $region14: #{a_call__.3} parent=11 // pred_check_branch
          %181 = sbr.rel (%p179) target = $region16
        $region15: #{a_call__.3} parent=11 // pred_region
          %s182 = smul.u32 2, %s21
          %p183 = scmp.lt.s32.totalorder %s182, 1
          %s184 = scalar_select %p183, %s182, 1
          %s185 = smul.addr %s184, 4
          %s186 = scalar_lea.vmem %s0, %s185
          %s187 = smul.u32 2, %s21
        $region16: #{a_call__.3} parent=11 // pred_fallthru
          _
        // Predicated region
        $region17: #{a_call__.3} parent=11 // pred_check
          %p188 = pneg %p138
        $region18: #{a_call__.3} parent=11 // pred_check_branch
          %190 = sbr.rel (%p188) target = $region20
        $region19: #{a_call__.3} parent=11 // pred_region
          %s191 = smul.u32 2, %s21
          %p192 = scmp.lt.s32.totalorder %s191, 1
          %s193 = scalar_select %p192, %s191, 1
          %s194 = smul.addr %s193, 8
          %s195 = scalar_lea.vmem %s3, %s194
          %s196 = smul.u32 2, %s21
        $region20: #{a_call__.3} parent=11 // pred_fallthru
          _
      $region12: #{a_call__.3} parent=5 // pred_fallthru
        _
      %p197 = scmp.lt.s32.totalorder %s11, 5
      // Predicated region
      $region21: #{a_call__.3} parent=5 // pred_check
        %p198 = pneg %p197
      $region22: #{a_call__.3} parent=5 // pred_check_branch
        %200 = sbr.rel (%p198) target = $region24
      $region23: #{a_call__.3} parent=5 // pred_region
        // Predicated region
        $region25: #{a_call__.3} parent=23 // pred_check
          %p201 = pneg %p78
        $region26: #{a_call__.3} parent=23 // pred_check_branch
          %203 = sbr.rel (%p201) target = $region28
        $region27: #{a_call__.3} parent=23 // pred_region
          %p204 = scmp.lt.s32.totalorder %s19, 4
          %s205 = scalar_select %p204, %s19, 4
          %p206 = scmp.lt.s32.totalorder %s20, 0
          %s207 = scalar_select %p206, %s20, 0
          %s208 = smul.addr %s205, 8
          %s209 = sadd.s32 %s207, %s208
          %s210 = smul.addr %s209, 4
          %s211 = scalar_lea.vmem %s1, %s210
        $region28: #{a_call__.3} parent=23 // pred_fallthru
          _
        // Predicated region
        $region29: #{a_call__.3} parent=23 // pred_check
          %p212 = pneg %p106
        $region30: #{a_call__.3} parent=23 // pred_check_branch
          %214 = sbr.rel (%p212) target = $region32
        $region31: #{a_call__.3} parent=23 // pred_region
          %s215 = smul.u32 8, %s20
          %p216 = scmp.lt.s32.totalorder %s19, 4
          %s217 = scalar_select %p216, %s19, 4
          %p218 = scmp.lt.s32.totalorder %s215, 7
          %s219 = scalar_select %p218, %s215, 7
          %s220 = smul.addr %s217, 8
          %s221 = sadd.s32 %s219, %s220
          %s222 = smul.addr %s221, 4
          %s223 = scalar_lea.vmem %s2, %s222
          %s224 = smul.u32 8, %s20
        $region32: #{a_call__.3} parent=23 // pred_fallthru
          _
      $region24: #{a_call__.3} parent=5 // pred_fallthru
        _
      %p225 = scmp.le.s32.totalorder 1, %s11
      %p226 = scmp.lt.s32.totalorder %s11, 6
      %p227 = pnand %p225, %p226
      %p228 = pneg %p227
      // Predicated region
      $region33: #{a_call__.3} parent=5 // pred_check
        _
      $region34: #{a_call__.3} parent=5 // pred_check_branch
        %230 = sbr.rel (%p227) target = $region36
      $region35: #{a_call__.3} parent=5 // pred_region
        %s231 = ssub.s32 %s11, 1
        %s232 = smul.u32 2, %s21
        %p233 = scmp.lt.s32.totalorder %s232, 1
        %s234 = scalar_select %p233, %s232, 1
        %s235 = smul.addr %s234, 4
        %s236 = scalar_lea.vmem %s0, %s235
        %p237 = pneg %p56
        %p238 = pneg %p53
        %p239 = scmp.lt.s32.totalorder %s22, 4
        %s240 = scalar_select %p239, %s22, 4
        %p241 = scmp.lt.s32.totalorder %s23, 0
        %s242 = scalar_select %p241, %s23, 0
        %s243 = smul.addr %s240, 8
        %s244 = sadd.s32 %s242, %s243
        %s245 = smul.addr %s244, 4
        %s246 = scalar_lea.vmem %s1, %s245
        %p247 = pneg %p84
        %p248 = pneg %p81
        %s249 = smul.u32 8, %s23
        %p250 = scmp.lt.s32.totalorder %s22, 4
        %s251 = scalar_select %p250, %s22, 4
        %p252 = scmp.lt.s32.totalorder %s249, 7
        %s253 = scalar_select %p252, %s249, 7
        %s254 = smul.addr %s251, 8
        %s255 = sadd.s32 %s253, %s254
        %s256 = smul.addr %s255, 4
        %s257 = scalar_lea.vmem %s2, %s256
        %p258 = pneg %p112
        %p259 = pneg %p109
        %s260 = smul.u32 2, %s21
        %p261 = scmp.lt.s32.totalorder %s260, 1
        %s262 = scalar_select %p261, %s260, 1
        %s263 = smul.addr %s262, 8
        %s264 = scalar_lea.vmem %s3, %s263
        %p265 = pneg %p138
        %p266 = pneg %p135
        %p267 = pneg %p164
        %p268 = pneg %p161
        %s269 = smul.u32 2, %s21
        %p270 = scmp.lt.s32.totalorder %s269, 1
        %s271 = scalar_select %p270, %s269, 1
        %s272 = smul.addr %s271, 4
        %s273 = scalar_lea.vmem %s0, %s272
        %s274 = smul.u32 2, %s21
        %p275 = scmp.lt.s32.totalorder %s22, 4
        %s276 = scalar_select %p275, %s22, 4
        %p277 = scmp.lt.s32.totalorder %s23, 0
        %s278 = scalar_select %p277, %s23, 0
        %s279 = smul.addr %s276, 8
        %s280 = sadd.s32 %s278, %s279
        %s281 = smul.addr %s280, 4
        %s282 = scalar_lea.vmem %s1, %s281
        %s283 = smul.u32 8, %s23
        %p284 = scmp.lt.s32.totalorder %s22, 4
        %s285 = scalar_select %p284, %s22, 4
        %p286 = scmp.lt.s32.totalorder %s283, 7
        %s287 = scalar_select %p286, %s283, 7
        %s288 = smul.addr %s285, 8
        %s289 = sadd.s32 %s287, %s288
        %s290 = smul.addr %s289, 4
        %s291 = scalar_lea.vmem %s2, %s290
        %s292 = smul.u32 8, %s23
        %s293 = smul.u32 2, %s21
        %p294 = scmp.lt.s32.totalorder %s293, 1
        %s295 = scalar_select %p294, %s293, 1
        %s296 = smul.addr %s295, 8
        %s297 = scalar_lea.vmem %s3, %s296
        %s298 = smul.u32 2, %s21
        %s299 = smul.u32 2, %s21
        %p301 = scmp.eq.s32.totalorder %s22, 0
        %p302 = scmp.eq.s32.totalorder %s23, 0
        %p303 = pnand %p301, %p302
        %p304 = pneg %p303
        // Predicated region
        $region37: #{a_call__.3} parent=35 // pred_check
          _
        $region38: #{a_call__.3} parent=35 // pred_check_branch
          %306 = sbr.rel (%p303) target = $region40
        $region39: #{a_call__.3} parent=35 // pred_region
          %vm307 = vcmask 261120
          %308 = vst.msk [vmem:[#allocation2] sm:$0xff] %vm307, 0.0
          %309 = vst.msk [vmem:[#allocation2 + $0x8] sm:$0xff] %vm307, 0.0
        $region40: #{a_call__.3} parent=35 // pred_fallthru
          _
        // Predicated region
        $region41: #{a_call__.3} parent=35 // pred_check
          %p310 = pneg %p302
        $region42: #{a_call__.3} parent=35 // pred_check_branch
          %312 = sbr.rel (%p310) target = $region44
        $region43: #{a_call__.3} parent=35 // pred_region
          %v313 = vld [vmem:[%s297] sm:$0xff]
          %v314 = vld [vmem:[%s297 + $0x8] sm:$0xff]
          %v315 = vlaneseq
          %v316 = vand.u32 %v315, 127
          %v317 = vstv %s22
          %vm318 = vcmp.eq.s32.totalorder %v316, %v317
          %v319 = vsel %vm318, %v313, 0.0
          %v320 = vsel %vm318, %v314, 0.0
          %vm321 = vcmask 39936
          %v322 = vsel %vm321, %v319, 0.0
          %323 = vadd.xlane.f32.xlu0 %v322
          %v324 = vpop.xlane.xlu0 %323
          %v325 = vsel %vm321, %v320, 0.0
          %326 = vadd.xlane.f32.xlu0 %v325
          %v327 = vpop.xlane.xlu0 %326
          %vm328 = vcmask 7168
          %329 = vst.msk [vmem:[#allocation3] sm:$0xff] %vm328, %v324
          %330 = vst.msk [vmem:[#allocation3 + $0x8] sm:$0xff] %vm328, %v327
        $region44: #{a_call__.3} parent=35 // pred_fallthru
          _
        %v331 = vld [vmem:[%s273] sm:$0xf]
        %v332 = vld [vmem:[%s273 + $0x4] sm:$0xf]
        %v333 = vld [vmem:[%s282] sm:$0xf]
        %v334 = vld [vmem:[%s282 + $0x4] sm:$0xf]
        %v335 = vld [vmem:[%s282 + $0x8] sm:$0xf]
        %v336 = vld [vmem:[%s282 + $0xc] sm:$0xf]
        %v339 = vunpack.c.l.b16 %v331
        %v340 = vunpack.c.l.b16 %v332
        %v341 = vpack.c.b16 %v340, %v339
        %v346 = vunpack.c.l.b16 %v333
        %v347 = vunpack.c.l.b16 %v334
        %v348 = vunpack.c.l.b16 %v335
        %v349 = vunpack.c.l.b16 %v336
        %v350 = vpack.c.b16 %v347, %v346
        %v351 = vpack.c.b16 %v349, %v348
        %vm354 = vcmask 261120
        %v356 = vsel %vm354, %v341, 0
        %358 = vmatprep.subr.bf16.mxu0 0
        %359 = vmatpush1.bf16.msra.mxu0 %v350
        %360 = vmatprep.subr.bf16.mxu0 0
        %361 = vmatpush1.bf16.msra.mxu0 %v351
        %362 = vmatprep.subr.bf16.mxu0 0
        %363 = vmatpush1.bf16.msra.mxu0 0
        %364 = vmatprep.subr.bf16.mxu0 0
        %365 = vmatpush1.bf16.msra.mxu0 0
        %366 = vmatprep.subr.bf16.mxu0 0
        %367 = vmatpush1.bf16.msra.mxu0 0
        %368 = vmatprep.subr.bf16.mxu0 0
        %369 = vmatpush1.bf16.msra.mxu0 0
        %370 = vmatprep.subr.bf16.mxu0 0
        %371 = vmatpush1.bf16.msra.mxu0 0
        %372 = vmatprep.subr.bf16.mxu0 0
        %373 = vmatpush1.bf16.msra.mxu0 0
        %374 = vmatprep.subr.bf16.mxu0 0
        %375 = vmatpush1.bf16.msra.mxu0 0
        %376 = vmatprep.subr.bf16.mxu0 0
        %377 = vmatpush1.bf16.msra.mxu0 0
        %378 = vmatprep.subr.bf16.mxu0 0
        %379 = vmatpush1.bf16.msra.mxu0 0
        %380 = vmatprep.subr.bf16.mxu0 0
        %381 = vmatpush1.bf16.msra.mxu0 0
        %382 = vmatprep.subr.bf16.mxu0 0
        %383 = vmatpush1.bf16.msra.mxu0 0
        %384 = vmatprep.subr.bf16.mxu0 0
        %385 = vmatpush1.bf16.msra.mxu0 0
        %386 = vmatprep.subr.bf16.mxu0 0
        %387 = vmatpush1.bf16.msra.mxu0 0
        %388 = vmatprep.subr.bf16.mxu0 0
        %389 = vmatpush1.bf16.msra.mxu0 0
        %390 = vmatprep.mubr.bf16.mxu0 0
        %391 = vmatmul.mubr.bf16.gmra.mrb[0].mxu0 %v356
        %v392 = vpop.f32.mrb[0].mxu0
        %v393 = vadd.f32 0.0, %v392
        %v394 = vpop.f32.mrb[0].mxu0
        %v395 = vpop.f32.mrb[0].mxu0
        %v396 = vadd.f32 0.0, %v395
        %v397 = vpop.f32.mrb[0].mxu0
        %398 = vdwg.mxu0
        %s399 = scalar_lea.vmem %s282, 16
        %v400 = vld [vmem:[%s399] sm:$0xf]
        %v401 = vld [vmem:[%s399 + $0x4] sm:$0xf]
        %v402 = vld [vmem:[%s399 + $0x8] sm:$0xf]
        %v403 = vld [vmem:[%s399 + $0xc] sm:$0xf]
        %v408 = vunpack.c.l.b16 %v400
        %v409 = vunpack.c.l.b16 %v401
        %v410 = vunpack.c.l.b16 %v402
        %v411 = vunpack.c.l.b16 %v403
        %v412 = vpack.c.b16 %v409, %v408
        %v413 = vpack.c.b16 %v411, %v410
        %416 = vmatprep.subr.bf16.mxu0 0
        %417 = vmatpush1.bf16.msra.mxu0 %v412
        %418 = vmatprep.subr.bf16.mxu0 0
        %419 = vmatpush1.bf16.msra.mxu0 %v413
        %420 = vmatprep.subr.bf16.mxu0 0
        %421 = vmatpush1.bf16.msra.mxu0 0
        %422 = vmatprep.subr.bf16.mxu0 0
        %423 = vmatpush1.bf16.msra.mxu0 0
        %424 = vmatprep.subr.bf16.mxu0 0
        %425 = vmatpush1.bf16.msra.mxu0 0
        %426 = vmatprep.subr.bf16.mxu0 0
        %427 = vmatpush1.bf16.msra.mxu0 0
        %428 = vmatprep.subr.bf16.mxu0 0
        %429 = vmatpush1.bf16.msra.mxu0 0
        %430 = vmatprep.subr.bf16.mxu0 0
        %431 = vmatpush1.bf16.msra.mxu0 0
        %432 = vmatprep.subr.bf16.mxu0 0
        %433 = vmatpush1.bf16.msra.mxu0 0
        %434 = vmatprep.subr.bf16.mxu0 0
        %435 = vmatpush1.bf16.msra.mxu0 0
        %436 = vmatprep.subr.bf16.mxu0 0
        %437 = vmatpush1.bf16.msra.mxu0 0
        %438 = vmatprep.subr.bf16.mxu0 0
        %439 = vmatpush1.bf16.msra.mxu0 0
        %440 = vmatprep.subr.bf16.mxu0 0
        %441 = vmatpush1.bf16.msra.mxu0 0
        %442 = vmatprep.subr.bf16.mxu0 0
        %443 = vmatpush1.bf16.msra.mxu0 0
        %444 = vmatprep.subr.bf16.mxu0 0
        %445 = vmatpush1.bf16.msra.mxu0 0
        %446 = vmatprep.subr.bf16.mxu0 0
        %447 = vmatpush1.bf16.msra.mxu0 0
        %448 = vmatprep.mubr.bf16.mxu0 0
        %449 = vmatmul.mubr.bf16.gmra.mrb[0].mxu0 %v356
        %v450 = vpop.f32.mrb[0].mxu0
        %v451 = vadd.f32 0.0, %v450
        %v452 = vpop.f32.mrb[0].mxu0
        %v453 = vpop.f32.mrb[0].mxu0
        %v454 = vadd.f32 0.0, %v453
        %v455 = vpop.f32.mrb[0].mxu0
        %456 = vdwg.mxu0
        %v457 = vxor.u32 %v393, 2147483648
        %v458 = vxor.u32 %v396, 2147483648
        %v459 = vmul.f32 %v457, 1.442695
        %v460 = vpow.pop %v459
        %v461 = vmul.f32 %v458, 1.442695
        %v462 = vpow.pop %v461
        %v463 = vadd.f32 %v460, 1.0
        %v464 = vadd.f32 %v462, 1.0
        %v465 = vrcp.pop %v463
        %v466 = vmul.f32 1.0, %v465
        %v467 = vrcp.pop %v464
        %v468 = vmul.f32 1.0, %v467
        %v469 = vmul.f32 %v393, %v466
        %v470 = vmul.f32 %v396, %v468
        %v471 = vmul.f32 %v469, %v451
        %v472 = vmul.f32 %v470, %v454
        %v473 = vld [vmem:[#allocation3] sm:$0xff]
        %v474 = vld [vmem:[#allocation3 + $0x8] sm:$0xff]
        %476 = vset.pattern.permute.xlu0 0
        %477 = vperm.xlu0 %476, %v473
        %v478 = vpop.permute.xlu0 %477
        %481 = vset.pattern.permute.xlu0 0
        %482 = vperm.xlu0 %481, %v474
        %v483 = vpop.permute.xlu0 %482
        %v485 = vmul.f32 %v471, %v478
        %v486 = vmul.f32 %v472, %v483
        %v487 = vpack.c.bf16 %v486, %v485
        %v488 = vld [vmem:[#allocation2] sm:$0xff]
        %v489 = vld [vmem:[#allocation2 + $0x8] sm:$0xff]
        %v490 = vld [vmem:[%s291] sm:$0xf]
        %v491 = vld [vmem:[%s291 + $0x4] sm:$0xf]
        %v492 = vld [vmem:[%s291 + $0x8] sm:$0xf]
        %v493 = vld [vmem:[%s291 + $0xc] sm:$0xf]
        %v494 = vld [vmem:[%s291 + $0x10] sm:$0xf]
        %v495 = vld [vmem:[%s291 + $0x14] sm:$0xf]
        %v496 = vld [vmem:[%s291 + $0x18] sm:$0xf]
        %v497 = vld [vmem:[%s291 + $0x1c] sm:$0xf]
        %v506 = vunpack.c.l.b16 %v490
        %v507 = vunpack.c.l.b16 %v491
        %v508 = vunpack.c.l.b16 %v492
        %v509 = vunpack.c.l.b16 %v493
        %v510 = vunpack.c.l.b16 %v494
        %v511 = vunpack.c.l.b16 %v495
        %v512 = vunpack.c.l.b16 %v496
        %v513 = vunpack.c.l.b16 %v497
        %v514 = vpack.c.b16 %v507, %v506
        %v515 = vpack.c.b16 %v509, %v508
        %v516 = vpack.c.b16 %v511, %v510
        %v517 = vpack.c.b16 %v513, %v512
        %vm522 = vcmask 523264
        %v524 = vsel %vm522, %v487, 0
        %526 = vmatprep.subr.bf16.mxu0 0
        %527 = vmatpush1.bf16.msra.mxu0 %v514
        %528 = vmatprep.subr.bf16.mxu0 0
        %529 = vmatpush1.bf16.msra.mxu0 %v515
        %530 = vmatprep.subr.bf16.mxu0 0
        %531 = vmatpush1.bf16.msra.mxu0 %v516
        %532 = vmatprep.subr.bf16.mxu0 0
        %533 = vmatpush1.bf16.msra.mxu0 %v517
        %534 = vmatprep.subr.bf16.mxu0 0
        %535 = vmatpush1.bf16.msra.mxu0 0
        %536 = vmatprep.subr.bf16.mxu0 0
        %537 = vmatpush1.bf16.msra.mxu0 0
        %538 = vmatprep.subr.bf16.mxu0 0
        %539 = vmatpush1.bf16.msra.mxu0 0
        %540 = vmatprep.subr.bf16.mxu0 0
        %541 = vmatpush1.bf16.msra.mxu0 0
        %542 = vmatprep.subr.bf16.mxu0 0
        %543 = vmatpush1.bf16.msra.mxu0 0
        %544 = vmatprep.subr.bf16.mxu0 0
        %545 = vmatpush1.bf16.msra.mxu0 0
        %546 = vmatprep.subr.bf16.mxu0 0
        %547 = vmatpush1.bf16.msra.mxu0 0
        %548 = vmatprep.subr.bf16.mxu0 0
        %549 = vmatpush1.bf16.msra.mxu0 0
        %550 = vmatprep.subr.bf16.mxu0 0
        %551 = vmatpush1.bf16.msra.mxu0 0
        %552 = vmatprep.subr.bf16.mxu0 0
        %553 = vmatpush1.bf16.msra.mxu0 0
        %554 = vmatprep.subr.bf16.mxu0 0
        %555 = vmatpush1.bf16.msra.mxu0 0
        %556 = vmatprep.subr.bf16.mxu0 0
        %557 = vmatpush1.bf16.msra.mxu0 0
        %558 = vmatprep.mubr.bf16.mxu0 0
        %559 = vmatmul.mubr.bf16.gmra.mrb[0].mxu0 %v524
        %v560 = vpop.f32.mrb[0].mxu0
        %v561 = vadd.f32 0.0, %v560
        %v562 = vpop.f32.mrb[0].mxu0
        %v563 = vpop.f32.mrb[0].mxu0
        %v564 = vadd.f32 0.0, %v563
        %v565 = vpop.f32.mrb[0].mxu0
        %566 = vdwg.mxu0
        %v567 = vadd.f32 %v488, %v561
        %v568 = vadd.f32 %v489, %v564
        %569 = vst.msk [vmem:[#allocation2] sm:$0xff] %vm354, %v567
        %570 = vst.msk [vmem:[#allocation2 + $0x8] sm:$0xff] %vm354, %v568
        %p571 = scmp.eq.s32.totalorder %s22, 4
        %p572 = pnand %p571, %p302
        %p573 = pneg %p572
        // Predicated region
        $region45: #{a_call__.3} parent=35 // pred_check
          _
        $region46: #{a_call__.3} parent=35 // pred_check_branch
          %575 = sbr.rel (%p572) target = $region48
        $region47: #{a_call__.3} parent=35 // pred_region
          %v576 = vld [vmem:[#allocation2] sm:$0xff]
          %v577 = vld [vmem:[#allocation2 + $0x8] sm:$0xff]
          %578 = vst.msk [vmem:[#allocation4] sm:$0xff] %vm354, %v576
          %579 = vst.msk [vmem:[#allocation4 + $0x8] sm:$0xff] %vm354, %v577
        $region48: #{a_call__.3} parent=35 // pred_fallthru
          _
        // Predicated region
        $region49: #{a_call__.3} parent=35 // pred_check
          %p580 = pneg %p161
        $region50: #{a_call__.3} parent=35 // pred_check_branch
          %582 = sbr.rel (%p580) target = $region52
        $region51: #{a_call__.3} parent=35 // pred_region
          %s583 = smul.u32 2, %s21
          %s585 = ssub.s32 256, 256
          %586 = vsyncadd [#allocation5], %s585
          %s587 = smul.addr %s583, 128
          %s588 = scalar_lea.hbm %s4, %s587
          %s589 = sshll.u32 [#allocation4], 4
          %s590 = int_to_ptr.vmem [resolvable:$true] %s589
          %595 = dma.vmem_to_hbm [thread:$0]  %s590, 256, %s588, [#allocation5], 128, 128, 8
        $region52: #{a_call__.3} parent=35 // pred_fallthru
          _
        // Predicated region
        $region53: #{a_call__.3} parent=35 // pred_check
          %p596 = pneg %p161
        $region54: #{a_call__.3} parent=35 // pred_check_branch
          %598 = sbr.rel (%p596) target = $region56
        $region55: #{a_call__.3} parent=35 // pred_region
          %599 = dma.done [#allocation5], 256
        $region56: #{a_call__.3} parent=35 // pred_fallthru
          _
      $region36: #{a_call__.3} parent=5 // pred_fallthru
        _
      %p600 = scmp.le.s32.totalorder 2, %s11
      // Predicated region
      $region57: #{a_call__.3} parent=5 // pred_check
        %p601 = pneg %p600
      $region58: #{a_call__.3} parent=5 // pred_check_branch
        %603 = sbr.rel (%p601) target = $region60
      $region59: #{a_call__.3} parent=5 // pred_region
        %s604 = ssub.s32 %s11, 2
      $region60: #{a_call__.3} parent=5 // pred_fallthru
        _
    $region6: #{a_call__.3} parent=1 // loop_footer
      %s15 = sadd.s32 1, %s11
    $region7: #{a_call__.3} parent=1 // loop_footer_branch
      %10 = sbr.rel target = $region3
    $region8: #{a_call__.3} parent=1 // loop_exit
      _
    %605 = vsyncpa [#allocation5], 1
    %s606 = scalar_lea.sflag [#allocation5], 1
    %607 = vsyncpa %s606, 1

</llo_original>
